<compile_context>
chip_gen: v6e
topology: v6e:2x2x1
jax: 0.10.0
libtpu: 0.0.40
codegen_flags: <defaults>
</compile_context>

<pallas_src>
import functools

import jax
import jax.numpy as jnp
from jax import lax
from jax.experimental import pallas as pl
from jax.experimental.pallas import tpu as pltpu


def _dice_sums_kernel(p_ref, t_ref, num_ref, den_ref, num_acc, den_acc, *,
                      p, d_sub, tk, n_blocks, needs_mask):
    """grid = (row_blocks [parallel], d_chunks [arbitrary/reduction])."""
    j = pl.program_id(1)

    @pl.when(j == 0)
    def _():
        num_acc[...] = jnp.zeros_like(num_acc)
        den_acc[...] = jnp.zeros_like(den_acc)

    n_chunks = (tk + 127) // 128

    def _pow(x):
        if p == 1:
            return x
        if p == 2:
            return x * x
        if isinstance(p, int):
            return lax.integer_pow(x, p)
        return x ** p  # non-integer p: EUP exp/log path

    def _step(col_base):
        # col_base: static global column of this block's first lane (only for the
        # ragged last block), or None for the unmasked fast path.
        for k in range(n_chunks):
            lo = k * 128
            w = min(128, tk - lo)
            ragged_lanes = 0
            if col_base is not None:
                gstart = col_base + lo
                if gstart >= d_sub:
                    continue                       # chunk entirely past the feature dim
                if gstart + w > d_sub:
                    ragged_lanes = d_sub - gstart  # static
            pred = p_ref[:, lo:lo + w].astype(jnp.float32)
            targ = t_ref[:, lo:lo + w].astype(jnp.float32)
            if ragged_lanes:
                lane = lax.broadcasted_iota(jnp.int32, pred.shape, 1)
                valid = lane < ragged_lanes
                pred = jnp.where(valid, pred, 0.0)
                targ = jnp.where(valid, targ, 0.0)
            # Accumulator width == chunk width: full-width VPU adds in the hot loop.
            num_acc[...] += pred * targ
            den_acc[...] += _pow(pred) + _pow(targ)

    if needs_mask:
        @pl.when(j < n_blocks - 1)
        def _():
            _step(None)                            # interior steps: no mask cost

        @pl.when(j == n_blocks - 1)
        def _():
            _step((n_blocks - 1) * tk)             # only the ragged step pays the mask
    else:
        _step(None)

    @pl.when(j == n_blocks - 1)
    def _():
        # Single deferred cross-lane (XLU) reduce + narrow store per row block.
        num_ref[...] = jnp.sum(num_acc[...], axis=1, keepdims=True)
        den_ref[...] = jnp.sum(den_acc[...], axis=1, keepdims=True)


def _vmem_plan():
    """Returns (tile budget bytes, vmem_limit_bytes) sized per TPU generation."""
    try:
        cap = pltpu.get_tpu_info().vmem_capacity_bytes
    except Exception:
        cap = 64 * 1024 * 1024                     # assume the smallest (v7x) if unknown
    if cap > 64 * 1024 * 1024:                     # v5e / v6e: 128 MiB physical VMEM
        return 56 * 1024 * 1024, 96 * 1024 * 1024
    return 24 * 1024 * 1024, 32 * 1024 * 1024      # v7x: 64 MiB physical VMEM


def binary_dice_loss(predict, target, *, smooth=1.0, p=2, reduction="mean",
                     block_d=None):
    assert predict.shape[0] == target.shape[0], "batch size mismatch"
    n = predict.shape[0]
    predict = predict.reshape(n, -1)
    target = target.reshape(n, -1)
    assert predict.shape[1] == target.shape[1], "flattened feature size mismatch"
    d = predict.shape[1]

    p_bytes = predict.dtype.itemsize
    t_bytes = target.dtype.itemsize
    min_item = min(p_bytes, t_bytes)
    row_align = max(8, 32 // min_item)             # native 2nd-minor tile height

    # Fill sublanes when N is small: view [N, D] as [N*R, D/R] (row-major,
    # sum-preserving).  Prefer R that keeps the lane dim >= 128 columns wide.
    r = 1
    if n < row_align:
        for cand in (row_align, 8, 4, 2):
            if d % cand == 0 and (d // cand) >= 128:
                r = cand
                break
        else:
            for cand in (8, 4, 2):
                if d % cand == 0:
                    r = cand
                    break
    rows = n * r
    d_sub = d // r
    predict = predict.reshape(rows, d_sub)
    target = target.reshape(rows, d_sub)

    # ---- row-block ("parallel" / megacore) axis -------------------------------
    if rows < 2 * row_align:
        row_block = rows                           # single block (equals full dim)
    else:
        row_block = min(512, max(row_align, ((rows // 2) // row_align) * row_align))
    n_row_blocks = pl.cdiv(rows, row_block)

    # ---- reduction-axis tile width --------------------------------------------
    vmem_budget, vmem_limit = _vmem_plan()
    acc_bytes = 2 * row_block * 128 * 4                      # two narrow f32 accumulators
    bytes_per_col = row_block * 2 * (p_bytes + t_bytes)      # double-buffered input tiles
    tk_budget = max(128, (vmem_budget - acc_bytes) // bytes_per_col)
    min_steps = 4                                            # keep the DMA pipeline busy
    tk_pipeline = max(512, pl.cdiv(d_sub, min_steps))

    if d_sub <= 128:
        tk = d_sub
    else:
        tk = block_d if block_d is not None else min(tk_budget, tk_pipeline, 32768)
        tk = max(128, (tk // 128) * 128)                     # lane-aligned
        tk = min(tk, (d_sub // 128) * 128)                   # never wider than the array
    n_blocks = pl.cdiv(d_sub, tk)
    needs_mask = (n_blocks * tk) != d_sub
    acc_w = min(128, tk)

    kernel = functools.partial(
        _dice_sums_kernel, p=p, d_sub=d_sub, tk=tk, n_blocks=n_blocks,
        needs_mask=needs_mask)

    uses_eup_pow = not (p in (1, 2) or isinstance(p, int))
    cost = pl.CostEstimate(
        flops=6 * n * d,
        transcendentals=(4 * n * d) if uses_eup_pow else 0,
        bytes_accessed=n * d * (p_bytes + t_bytes) + 2 * rows * 4,
    )

    num_out, den_out = pl.pallas_call(
        kernel,
        out_shape=(jax.ShapeDtypeStruct((rows, 1), jnp.float32),
                   jax.ShapeDtypeStruct((rows, 1), jnp.float32)),
        grid_spec=pltpu.PrefetchScalarGridSpec(
            num_scalar_prefetch=0,
            grid=(n_row_blocks, n_blocks),
            in_specs=[
                pl.BlockSpec((row_block, tk), lambda i, j: (i, j)),
                pl.BlockSpec((row_block, tk), lambda i, j: (i, j)),
            ],
            out_specs=[
                pl.BlockSpec((row_block, 1), lambda i, j: (i, 0)),
                pl.BlockSpec((row_block, 1), lambda i, j: (i, 0)),
            ],
            scratch_shapes=[
                pltpu.VMEM((row_block, acc_w), jnp.float32),
                pltpu.VMEM((row_block, acc_w), jnp.float32),
            ],
        ),
        compiler_params=pltpu.CompilerParams(
            dimension_semantics=("parallel", "arbitrary"),
            vmem_limit_bytes=vmem_limit),
        cost_estimate=cost,
    )(predict, target)

    # Tiny glue: sum the R sub-row partials per batch, then dice.
    num = num_out[:, 0].reshape(n, r).sum(axis=1) + smooth
    den = den_out[:, 0].reshape(n, r).sum(axis=1) + smooth
    loss = 1.0 - num / den

    if reduction == "mean":
        return loss.mean()
    elif reduction == "sum":
        return loss.sum()
    elif reduction == "none":
        return loss
    else:
        raise Exception("Unexpected reduction {}".format(reduction))


if __name__ == "__main__":
    key = jax.random.PRNGKey(0)
    k1, k2, k3, k4 = jax.random.split(key, 4)

    def ref_loss(pred, targ, smooth=1.0, p=2, reduction="mean"):
        pf = pred.reshape(pred.shape[0], -1).astype(jnp.float32)
        tf = targ.reshape(targ.shape[0], -1).astype(jnp.float32)
        num = jnp.sum(pf * tf, axis=1) + smooth
        den = jnp.sum(pf ** p + tf ** p, axis=1) + smooth
        loss = 1.0 - num / den
        if reduction == "mean":
            return loss.mean()
        if reduction == "sum":
            return loss.sum()
        return loss

    # 1) Primary case: [N, C, H, W] segmentation maps, f32 (megacore row split).
    n, c, h, w = 2, 4, 16, 16
    predict = jax.nn.sigmoid(jax.random.normal(k1, (n, c, h, w), jnp.float32))
    target = (jax.random.uniform(k2, (n, c, h, w)) > 0.5).astype(jnp.float32)
    loss = jax.block_until_ready(binary_dice_loss(predict, target))
    assert jnp.allclose(loss, ref_loss(predict, target), rtol=1e-5, atol=1e-6), loss

    # 2) Same case with bf16 predict + f32 target (mixed low-precision inputs:
    #    the big HBM-bandwidth lever; kernel still accumulates in f32).
    predict_bf16 = predict.astype(jnp.bfloat16)
    loss_bf16 = jax.block_until_ready(binary_dice_loss(predict_bf16, target))
    assert jnp.allclose(loss_bf16, ref_loss(predict_bf16, target),
                        rtol=1e-5, atol=1e-6), loss_bf16

    # 3) Ragged multi-block case with forced small tiles: exercises the gated
    #    ragged-tail mask (only the last reduction step pays it).
    n2 = 3
    predict2 = jax.nn.sigmoid(jax.random.normal(k3, (n2, 1, 7, 37), jnp.float32))
    target2 = (jax.random.uniform(k4, (n2, 1, 7, 37)) > 0.5).astype(jnp.float32)
    loss2 = jax.block_until_ready(
        binary_dice_loss(predict2, target2, reduction="none", block_d=128))
    assert jnp.allclose(loss2, ref_loss(predict2, target2, reduction="none"),
                        rtol=1e-5, atol=1e-6), loss2

    # 4) Same ragged shape through the default tile-size path.
    loss3 = jax.block_until_ready(
        binary_dice_loss(predict2, target2, reduction="none"))
    assert jnp.allclose(loss3, ref_loss(predict2, target2, reduction="none"),
                        rtol=1e-5, atol=1e-6), loss3

    print("KERNEL_OK")
</pallas_src>

<mosaic_0001>
module attributes {stable_mosaic.version = 11 : i64} {
  func.func @_dice_sums_kernel(%arg0: i32, %arg1: i32, %arg2: memref<8x128xf32, #tpu.memory_space<vmem>>, %arg3: memref<8x128xf32, #tpu.memory_space<vmem>>, %arg4: memref<8x1xf32, #tpu.memory_space<vmem>>, %arg5: memref<8x1xf32, #tpu.memory_space<vmem>>, %arg6: memref<8x128xf32, #tpu.memory_space<vmem>>, %arg7: memref<8x128xf32, #tpu.memory_space<vmem>>) attributes {dimension_semantics = [#tpu.dimension_semantics<parallel>, #tpu.dimension_semantics<arbitrary>], iteration_bounds = array<i64: 2, 1>, scalar_prefetch = 0 : i64, scratch_operands = 2 : i64, tpu.core_type = #tpu.core_type<tc>, window_params = [{transform_indices = @transform_0, window_bounds = array<i64: 8, 128>}, {transform_indices = @transform_1, window_bounds = array<i64: 8, 128>}, {transform_indices = @transform_2, window_bounds = array<i64: 8, 1>}, {transform_indices = @transform_3, window_bounds = array<i64: 8, 1>}]} {
    %c0_i32 = arith.constant 0 : i32
    %0 = arith.cmpi eq, %arg1, %c0_i32 : i32
    %1 = arith.extui %0 : i1 to i32
    %c0_i32_0 = arith.constant 0 : i32
    %2 = arith.cmpi ne, %1, %c0_i32_0 : i32
    scf.if %2 {
      %cst = arith.constant 0.000000e+00 : f32
      %18 = vector.broadcast %cst : f32 to vector<8x128xf32>
      %c0_14 = arith.constant 0 : index
      %c0_15 = arith.constant 0 : index
      %19 = vector.load %arg6[%c0_14, %c0_15] : memref<8x128xf32, #tpu.memory_space<vmem>>, vector<8x128xf32>
      tpu.vector_store %arg6[%c0_14, %c0_15], %18 {strides = array<i32>} : memref<8x128xf32, #tpu.memory_space<vmem>>, vector<8x128xf32>,
      %cst_16 = arith.constant 0.000000e+00 : f32
      %20 = vector.broadcast %cst_16 : f32 to vector<8x128xf32>
      %c0_17 = arith.constant 0 : index
      %c0_18 = arith.constant 0 : index
      %21 = vector.load %arg7[%c0_17, %c0_18] : memref<8x128xf32, #tpu.memory_space<vmem>>, vector<8x128xf32>
      tpu.vector_store %arg7[%c0_17, %c0_18], %20 {strides = array<i32>} : memref<8x128xf32, #tpu.memory_space<vmem>>, vector<8x128xf32>,
    } else {
    }
    %c0 = arith.constant 0 : index
    %c0_1 = arith.constant 0 : index
    %3 = vector.load %arg2[%c0, %c0_1] : memref<8x128xf32, #tpu.memory_space<vmem>>, vector<8x128xf32>
    %c0_2 = arith.constant 0 : index
    %c0_3 = arith.constant 0 : index
    %4 = vector.load %arg3[%c0_2, %c0_3] : memref<8x128xf32, #tpu.memory_space<vmem>>, vector<8x128xf32>
    %c0_4 = arith.constant 0 : index
    %c0_5 = arith.constant 0 : index
    %5 = vector.load %arg6[%c0_4, %c0_5] : memref<8x128xf32, #tpu.memory_space<vmem>>, vector<8x128xf32>
    %6 = arith.mulf %3, %4 : vector<8x128xf32>
    %7 = arith.addf %5, %6 : vector<8x128xf32>
    %c0_6 = arith.constant 0 : index
    %c0_7 = arith.constant 0 : index
    %8 = vector.load %arg6[%c0_6, %c0_7] : memref<8x128xf32, #tpu.memory_space<vmem>>, vector<8x128xf32>
    tpu.vector_store %arg6[%c0_6, %c0_7], %7 {strides = array<i32>} : memref<8x128xf32, #tpu.memory_space<vmem>>, vector<8x128xf32>,
    %c0_8 = arith.constant 0 : index
    %c0_9 = arith.constant 0 : index
    %9 = vector.load %arg7[%c0_8, %c0_9] : memref<8x128xf32, #tpu.memory_space<vmem>>, vector<8x128xf32>
    %10 = arith.mulf %3, %3 : vector<8x128xf32>
    %11 = arith.mulf %4, %4 : vector<8x128xf32>
    %12 = arith.addf %10, %11 : vector<8x128xf32>
    %13 = arith.addf %9, %12 : vector<8x128xf32>
    %c0_10 = arith.constant 0 : index
    %c0_11 = arith.constant 0 : index
    %14 = vector.load %arg7[%c0_10, %c0_11] : memref<8x128xf32, #tpu.memory_space<vmem>>, vector<8x128xf32>
    tpu.vector_store %arg7[%c0_10, %c0_11], %13 {strides = array<i32>} : memref<8x128xf32, #tpu.memory_space<vmem>>, vector<8x128xf32>,
    %c0_i32_12 = arith.constant 0 : i32
    %15 = arith.cmpi eq, %arg1, %c0_i32_12 : i32
    %16 = arith.extui %15 : i1 to i32
    %c0_i32_13 = arith.constant 0 : i32
    %17 = arith.cmpi ne, %16, %c0_i32_13 : i32
    scf.if %17 {
      %c0_14 = arith.constant 0 : index
      %c0_15 = arith.constant 0 : index
      %18 = vector.load %arg6[%c0_14, %c0_15] : memref<8x128xf32, #tpu.memory_space<vmem>>, vector<8x128xf32>
      %cst = arith.constant dense<0.000000e+00> : vector<8xf32>
      %19 = vector.multi_reduction <add>, %18, %cst [1] : vector<8x128xf32> to vector<8xf32>
      %20 = vector.shape_cast %19 : vector<8xf32> to vector<8x1xf32>
      %c0_16 = arith.constant 0 : index
      %c0_17 = arith.constant 0 : index
      %21 = vector.load %arg4[%c0_16, %c0_17] : memref<8x1xf32, #tpu.memory_space<vmem>>, vector<8x1xf32>
      tpu.vector_store %arg4[%c0_16, %c0_17], %20 {strides = array<i32>} : memref<8x1xf32, #tpu.memory_space<vmem>>, vector<8x1xf32>,
      %c0_18 = arith.constant 0 : index
      %c0_19 = arith.constant 0 : index
      %22 = vector.load %arg7[%c0_18, %c0_19] : memref<8x128xf32, #tpu.memory_space<vmem>>, vector<8x128xf32>
      %cst_20 = arith.constant dense<0.000000e+00> : vector<8xf32>
      %23 = vector.multi_reduction <add>, %22, %cst_20 [1] : vector<8x128xf32> to vector<8xf32>
      %24 = vector.shape_cast %23 : vector<8xf32> to vector<8x1xf32>
      %c0_21 = arith.constant 0 : index
      %c0_22 = arith.constant 0 : index
      %25 = vector.load %arg5[%c0_21, %c0_22] : memref<8x1xf32, #tpu.memory_space<vmem>>, vector<8x1xf32>
      tpu.vector_store %arg5[%c0_21, %c0_22], %24 {strides = array<i32>} : memref<8x1xf32, #tpu.memory_space<vmem>>, vector<8x1xf32>,
    } else {
    }
    return
  }
  func.func @transform_0(%arg0: i32, %arg1: i32) -> (i32, i32) {
    %c0_i32 = arith.constant 0 : i32
    return %arg0, %arg1 : i32, i32
  }
  func.func @transform_1(%arg0: i32, %arg1: i32) -> (i32, i32) {
    %c0_i32 = arith.constant 0 : i32
    return %arg0, %arg1 : i32, i32
  }
  func.func @transform_2(%arg0: i32, %arg1: i32) -> (i32, i32) {
    %c0_i32 = arith.constant 0 : i32
    %c0_i32_0 = arith.constant 0 : i32
    return %arg0, %c0_i32 : i32, i32
  }
  func.func @transform_3(%arg0: i32, %arg1: i32) -> (i32, i32) {
    %c0_i32 = arith.constant 0 : i32
    %c0_i32_0 = arith.constant 0 : i32
    return %arg0, %c0_i32 : i32, i32
  }
}

</mosaic_0001>

<llo_original>
// kernel: tpu_custom_call.1
$region0: #{tpu_custom_call.1}
  #allocation0 [shape = 'u32[]', space=smem, size = 0x4, offset = 0x4, fixed_abs, tag = 'smem constant byte address 0x4 - core index']
  #allocation1 [shape = 'u32[144,128]{1,0:T(1,128)}', space=vmem, size = 0x12000, scoped, tag = 'internal scratch']
  #allocation2 [shape = 'f32[8,128]{1,0:T(8,128)}', space=vmem, size = 0x1000, scoped, tag = 'scratch operand']
  #allocation3 [shape = 'f32[8,128]{1,0:T(8,128)}', space=vmem, size = 0x1000, scoped, tag = 'scratch operand']
  %s0 = inlined_call_operand.hbm [shape: f32[16,128], index: 0, kind: input, shape index: {}]
  %s1 = inlined_call_operand.hbm [shape: f32[16,128], index: 1, kind: input, shape index: {}]
  %s2 = inlined_call_operand.vmem [shape: f32[16,1], index: 2, kind: output, shape index: {0}]
  %s3 = inlined_call_operand.vmem [shape: f32[16,1], index: 3, kind: output, shape index: {1}]
  %4 = xla_tuple %s2, %s3
  %s5 = sld [smem:[#allocation0]]
  $region65: #{tpu_custom_call.1} parent=0
    _
  %s7 = ssub.s32 1, %s5
  %s8 = scalar_select 0, %s7, %s5
  $region1: #{tpu_custom_call.1} parent=0
    #allocation4 [shape = 'u8[8192]{0}', space=vmem, size = 0x2000, scoped, tag = 'input window, operand 0']
    #allocation5 [shape = 's32[2]{0}', space=sflag, size = 0x8, scoped, tag = 'scoped memory for tpu_custom_call.1']
    #allocation6 [shape = 'u8[8192]{0}', space=vmem, size = 0x2000, scoped, tag = 'input window, operand 1']
    #allocation7 [shape = 's32[2]{0}', space=sflag, size = 0x8, scoped, tag = 'scoped memory for tpu_custom_call.1']
    %9 = vsyncpa [#allocation5], 0
    %s10 = scalar_lea.sflag [#allocation5], 1
    %11 = vsyncpa %s10, 0
    %12 = vsyncpa [#allocation7], 0
    %s13 = scalar_lea.sflag [#allocation7], 1
    %14 = vsyncpa %s13, 0
    loop: start=0, step=1, limit=4
    $region2: #{tpu_custom_call.1} parent=1 // loop_pre_header
      _
    $region3: #{tpu_custom_call.1} parent=1 // loop_header
      %s16 = sphi 0, %s20
      %p17 = scmp.ge.s32.totalorder %s16, 4
      %s23 = sphi 0, %s35
      %s24 = sphi 0, %s31
      %s25 = sphi 0, %s23
      %s26 = sphi 0, %s24
      %s27 = sphi 0, %s25
      %s28 = sphi 0, %s26
      %s40 = sphi 0, %s42
      %s43 = sphi 0, %s40
      %s44 = sphi 0, %s43
      %s60 = sphi 0, %s44
      %s68 = sphi 0, %s70
      %s71 = sphi 0, %s68
      %s72 = sphi 0, %s71
      %s88 = sphi 0, %s72
      %s94 = sphi 0, %s96
      %s97 = sphi 0, %s94
      %s98 = sphi 0, %s97
      %s114 = sphi 0, %s98
      %s120 = sphi 0, %s122
      %s123 = sphi 0, %s120
      %s124 = sphi 0, %s123
      %s140 = sphi 0, %s124
    $region4: #{tpu_custom_call.1} parent=1 // loop_header_branch
      %19 = sbr.rel (%p17) target = $region8
    $region5: #{tpu_custom_call.1} parent=1 // loop_body
      %s21 = ssub.s32 %s16, 1
      %s22 = ssub.s32 %s16, 2
      %s29 = sadd.s32 1, %s24
      %p30 = scmp.ge.s32.totalorder %s29, 1
      %s31 = scalar_select %p30, 0, %s29
      %s32 = sadd.s32 1, %s23
      %s33 = scalar_select %p30, %s32, %s23
      %p34 = scmp.ge.s32.totalorder %s33, 2
      %s35 = scalar_select %p34, 0, %s33
      %s36 = ssub.s32 %s23, %s35
      %s37 = ssub.s32 %s24, %s31
      %s38 = sor.u32 %s36, %s37
      %p39 = scmp.eq.s32.totalorder %s38, 0
      %s41 = sadd.s32 %s40, 1
      %s42 = scalar_select %p39, %s40, %s41
      %p45 = pneg %p39
      %p46 = scmp.eq.s32.totalorder %s16, 1
      %p47 = por %p45, %p46
      %p48 = scmp.ne.s32.totalorder %s40, %s43
      %p49 = scmp.eq.s32.totalorder %s16, 0
      %p50 = por %p48, %p49
      %p51 = scmp.ne.s32.totalorder %s40, %s43
      %p52 = scmp.eq.s32.totalorder %s21, 1
      %p53 = por %p51, %p52
      %p54 = scmp.ne.s32.totalorder %s43, %s44
      %p55 = scmp.eq.s32.totalorder %s21, 0
      %p56 = por %p54, %p55
      %p57 = scmp.ne.s32.totalorder %s43, %s44
      %p58 = scmp.eq.s32.totalorder %s22, 1
      %p59 = por %p57, %p58
      %p61 = scmp.ne.s32.totalorder %s44, %s60
      %p62 = scmp.eq.s32.totalorder %s22, 0
      %p63 = por %p61, %p62
      %s64 = ssub.s32 %s23, %s35
      %s65 = ssub.s32 %s24, %s31
      %s66 = sor.u32 %s64, %s65
      %p67 = scmp.eq.s32.totalorder %s66, 0
      %s69 = sadd.s32 %s68, 1
      %s70 = scalar_select %p67, %s68, %s69
      %p73 = pneg %p67
      %p74 = scmp.eq.s32.totalorder %s16, 1
      %p75 = por %p73, %p74
      %p76 = scmp.ne.s32.totalorder %s68, %s71
      %p77 = scmp.eq.s32.totalorder %s16, 0
      %p78 = por %p76, %p77
      %p79 = scmp.ne.s32.totalorder %s68, %s71
      %p80 = scmp.eq.s32.totalorder %s21, 1
      %p81 = por %p79, %p80
      %p82 = scmp.ne.s32.totalorder %s71, %s72
      %p83 = scmp.eq.s32.totalorder %s21, 0
      %p84 = por %p82, %p83
      %p85 = scmp.ne.s32.totalorder %s71, %s72
      %p86 = scmp.eq.s32.totalorder %s22, 1
      %p87 = por %p85, %p86
      %p89 = scmp.ne.s32.totalorder %s72, %s88
      %p90 = scmp.eq.s32.totalorder %s22, 0
      %p91 = por %p89, %p90
      %s92 = ssub.s32 %s23, %s35
      %p93 = scmp.eq.s32.totalorder %s92, 0
      %s95 = sadd.s32 %s94, 1
      %s96 = scalar_select %p93, %s94, %s95
      %p99 = pneg %p93
      %p100 = scmp.eq.s32.totalorder %s16, 1
      %p101 = por %p99, %p100
      %p102 = scmp.ne.s32.totalorder %s94, %s97
      %p103 = scmp.eq.s32.totalorder %s16, 0
      %p104 = por %p102, %p103
      %p105 = scmp.ne.s32.totalorder %s94, %s97
      %p106 = scmp.eq.s32.totalorder %s21, 1
      %p107 = por %p105, %p106
      %p108 = scmp.ne.s32.totalorder %s97, %s98
      %p109 = scmp.eq.s32.totalorder %s21, 0
      %p110 = por %p108, %p109
      %p111 = scmp.ne.s32.totalorder %s97, %s98
      %p112 = scmp.eq.s32.totalorder %s22, 1
      %p113 = por %p111, %p112
      %p115 = scmp.ne.s32.totalorder %s98, %s114
      %p116 = scmp.eq.s32.totalorder %s22, 0
      %p117 = por %p115, %p116
      %s118 = ssub.s32 %s23, %s35
      %p119 = scmp.eq.s32.totalorder %s118, 0
      %s121 = sadd.s32 %s120, 1
      %s122 = scalar_select %p119, %s120, %s121
      %p125 = pneg %p119
      %p126 = scmp.eq.s32.totalorder %s16, 1
      %p127 = por %p125, %p126
      %p128 = scmp.ne.s32.totalorder %s120, %s123
      %p129 = scmp.eq.s32.totalorder %s16, 0
      %p130 = por %p128, %p129
      %p131 = scmp.ne.s32.totalorder %s120, %s123
      %p132 = scmp.eq.s32.totalorder %s21, 1
      %p133 = por %p131, %p132
      %p134 = scmp.ne.s32.totalorder %s123, %s124
      %p135 = scmp.eq.s32.totalorder %s21, 0
      %p136 = por %p134, %p135
      %p137 = scmp.ne.s32.totalorder %s123, %s124
      %p138 = scmp.eq.s32.totalorder %s22, 1
      %p139 = por %p137, %p138
      %p141 = scmp.ne.s32.totalorder %s124, %s140
      %p142 = scmp.eq.s32.totalorder %s22, 0
      %p143 = por %p141, %p142
      %p144 = scmp.le.s32.totalorder 1, %s16
      %p145 = scmp.lt.s32.totalorder %s16, 3
      %p146 = pnand %p144, %p145
      %p147 = pneg %p146
      // Predicated region
      $region9: #{tpu_custom_call.1} parent=5 // pred_check
        _
      $region10: #{tpu_custom_call.1} parent=5 // pred_check_branch
        %149 = sbr.rel (%p146) target = $region12
      $region11: #{tpu_custom_call.1} parent=5 // pred_region
        %s150 = ssub.s32 %s16, 1
      $region12: #{tpu_custom_call.1} parent=5 // pred_fallthru
        _
      %p151 = scmp.lt.s32.totalorder %s16, 2
      // Predicated region
      $region13: #{tpu_custom_call.1} parent=5 // pred_check
        %p152 = pneg %p151
      $region14: #{tpu_custom_call.1} parent=5 // pred_check_branch
        %154 = sbr.rel (%p152) target = $region16
      $region15: #{tpu_custom_call.1} parent=5 // pred_region
        // Predicated region
        $region17: #{tpu_custom_call.1} parent=15 // pred_check
          %p155 = pneg %p50
        $region18: #{tpu_custom_call.1} parent=15 // pred_check_branch
          %157 = sbr.rel (%p155) target = $region20
        $region19: #{tpu_custom_call.1} parent=15 // pred_region
          %s158 = sand.u32 %s40, 1
          %s159 = scalar_lea.sflag [#allocation5], %s158
          %s160 = sand.u32 %s40, 1
          %s161 = smul.addr %s160, 8
          %s162 = scalar_lea.vmem [#allocation4], %s161
          %s164 = ssub.s32 128, 128
          %165 = vsyncadd %s159, %s164
          %s166 = sadd.s32 %s24, %s23
          %s167 = smul.addr %s166, 128
          %s168 = scalar_lea.hbm %s0, %s167
          %s170 = sshll.u32 %s162, 4
          %s171 = int_to_ptr.vmem [resolvable:$true] %s170
          %173 = dma.hbm_to_vmem [thread:$0]  %s168, 128, %s171, %s159
        $region20: #{tpu_custom_call.1} parent=15 // pred_fallthru
          _
        // Predicated region
        $region21: #{tpu_custom_call.1} parent=15 // pred_check
          %p174 = pneg %p78
        $region22: #{tpu_custom_call.1} parent=15 // pred_check_branch
          %176 = sbr.rel (%p174) target = $region24
        $region23: #{tpu_custom_call.1} parent=15 // pred_region
          %s177 = sand.u32 %s68, 1
          %s178 = scalar_lea.sflag [#allocation7], %s177
          %s179 = sand.u32 %s68, 1
          %s180 = smul.addr %s179, 8
          %s181 = scalar_lea.vmem [#allocation6], %s180
          %s183 = ssub.s32 128, 128
          %184 = vsyncadd %s178, %s183
          %s185 = sadd.s32 %s24, %s23
          %s186 = smul.addr %s185, 128
          %s187 = scalar_lea.hbm %s1, %s186
          %s189 = sshll.u32 %s181, 4
          %s190 = int_to_ptr.vmem [resolvable:$true] %s189
          %192 = dma.hbm_to_vmem [thread:$0]  %s187, 128, %s190, %s178
        $region24: #{tpu_custom_call.1} parent=15 // pred_fallthru
          _
      $region16: #{tpu_custom_call.1} parent=5 // pred_fallthru
        _
      %p193 = scmp.le.s32.totalorder 1, %s16
      %p194 = scmp.lt.s32.totalorder %s16, 3
      %p195 = pnand %p193, %p194
      %p196 = pneg %p195
      // Predicated region
      $region25: #{tpu_custom_call.1} parent=5 // pred_check
        _
      $region26: #{tpu_custom_call.1} parent=5 // pred_check_branch
        %198 = sbr.rel (%p195) target = $region28
      $region27: #{tpu_custom_call.1} parent=5 // pred_region
        %s199 = ssub.s32 %s16, 1
        %s200 = sand.u32 %s43, 1
        %s201 = scalar_lea.sflag [#allocation5], %s200
        %s202 = sand.u32 %s43, 1
        %s203 = smul.addr %s202, 8
        %s204 = scalar_lea.vmem [#allocation4], %s203
        // Predicated region
        $region29: #{tpu_custom_call.1} parent=27 // pred_check
          %p205 = pneg %p56
        $region30: #{tpu_custom_call.1} parent=27 // pred_check_branch
          %207 = sbr.rel (%p205) target = $region32
        $region31: #{tpu_custom_call.1} parent=27 // pred_region
          %208 = dma.done %s201, 128
        $region32: #{tpu_custom_call.1} parent=27 // pred_fallthru
          _
        %s209 = sand.u32 %s71, 1
        %s210 = scalar_lea.sflag [#allocation7], %s209
        %s211 = sand.u32 %s71, 1
        %s212 = smul.addr %s211, 8
        %s213 = scalar_lea.vmem [#allocation6], %s212
        // Predicated region
        $region33: #{tpu_custom_call.1} parent=27 // pred_check
          %p214 = pneg %p84
        $region34: #{tpu_custom_call.1} parent=27 // pred_check_branch
          %216 = sbr.rel (%p214) target = $region36
        $region35: #{tpu_custom_call.1} parent=27 // pred_region
          %217 = dma.done %s210, 128
        $region36: #{tpu_custom_call.1} parent=27 // pred_fallthru
          _
        %s218 = sand.u32 %s43, 1
        %s219 = scalar_lea.sflag [#allocation5], %s218
        %s220 = sand.u32 %s43, 1
        %s221 = smul.addr %s220, 8
        %s222 = scalar_lea.vmem [#allocation4], %s221
        %p223 = pneg %p56
        %p224 = pneg %p53
        %s225 = sand.u32 %s71, 1
        %s226 = scalar_lea.sflag [#allocation7], %s225
        %s227 = sand.u32 %s71, 1
        %s228 = smul.addr %s227, 8
        %s229 = scalar_lea.vmem [#allocation6], %s228
        %p230 = pneg %p84
        %p231 = pneg %p81
        %p232 = pneg %p110
        %p233 = pneg %p107
        %p234 = scmp.lt.s32.totalorder %s25, 1
        %s235 = scalar_select %p234, %s25, 1
        %s236 = smul.addr %s235, 8
        %s237 = scalar_lea.vmem %s2, %s236
        %p238 = pneg %p136
        %p239 = pneg %p133
        %p240 = scmp.lt.s32.totalorder %s25, 1
        %s241 = scalar_select %p240, %s25, 1
        %s242 = smul.addr %s241, 8
        %s243 = scalar_lea.vmem %s3, %s242
        %p244 = scmp.lt.s32.totalorder %s25, 1
        %s245 = scalar_select %p244, %s25, 1
        %s246 = smul.addr %s245, 8
        %s247 = scalar_lea.vmem %s2, %s246
        %p248 = scmp.lt.s32.totalorder %s25, 1
        %s249 = scalar_select %p248, %s25, 1
        %s250 = smul.addr %s249, 8
        %s251 = scalar_lea.vmem %s3, %s250
        %p252 = scmp.eq.s32.totalorder %s26, 0
        // Predicated region
        $region37: #{tpu_custom_call.1} parent=27 // pred_check
          %p253 = pneg %p252
        $region38: #{tpu_custom_call.1} parent=27 // pred_check_branch
          %255 = sbr.rel (%p253) target = $region40
        $region39: #{tpu_custom_call.1} parent=27 // pred_region
          %256 = vst [vmem:[#allocation2] sm:$0xff] 0.0
          %257 = vst [vmem:[#allocation3] sm:$0xff] 0.0
        $region40: #{tpu_custom_call.1} parent=27 // pred_fallthru
          _
        %v258 = vld [vmem:[%s204] sm:$0xff]
        %v259 = vld [vmem:[%s213] sm:$0xff]
        %v260 = vld [vmem:[#allocation2] sm:$0xff]
        %v261 = vmul.f32 %v258, %v259
        %v262 = vadd.f32 %v260, %v261
        %263 = vst [vmem:[#allocation2] sm:$0xff] %v262
        %v264 = vld [vmem:[#allocation3] sm:$0xff]
        %v265 = vmul.f32 %v258, %v258
        %v266 = vmul.f32 %v259, %v259
        %v267 = vadd.f32 %v265, %v266
        %v268 = vadd.f32 %v264, %v267
        %269 = vst [vmem:[#allocation3] sm:$0xff] %v268
        // Predicated region
        $region41: #{tpu_custom_call.1} parent=27 // pred_check
          %p270 = pneg %p252
        $region42: #{tpu_custom_call.1} parent=27 // pred_check_branch
          %272 = sbr.rel (%p270) target = $region44
        $region43: #{tpu_custom_call.1} parent=27 // pred_region
          %v273 = vld [vmem:[#allocation2] sm:$0xff]
          %274 = vadd.xlane.f32.xlu0 %v273
          %v275 = vpop.xlane.xlu0 %274
          %vm276 = vcmask 7168
          %277 = vst.msk [vmem:[%s247] sm:$0xff] %vm276, %v275
          %v278 = vld [vmem:[#allocation3] sm:$0xff]
          %279 = vadd.xlane.f32.xlu0 %v278
          %v280 = vpop.xlane.xlu0 %279
          %281 = vst.msk [vmem:[%s251] sm:$0xff] %vm276, %v280
        $region44: #{tpu_custom_call.1} parent=27 // pred_fallthru
          _
        %p282 = scmp.lt.s32.totalorder %s25, 1
        %s283 = scalar_select %p282, %s25, 1
        %s284 = smul.addr %s283, 8
        %s285 = scalar_lea.vmem %s2, %s284
        %p286 = scmp.lt.s32.totalorder %s25, 1
        %s287 = scalar_select %p286, %s25, 1
        %s288 = smul.addr %s287, 8
        %s289 = scalar_lea.vmem %s3, %s288
        // Predicated region
        $region45: #{tpu_custom_call.1} parent=27 // pred_check
          %p290 = pneg %p107
        $region46: #{tpu_custom_call.1} parent=27 // pred_check_branch
          %292 = sbr.rel (%p290) target = $region48
        $region47: #{tpu_custom_call.1} parent=27 // pred_region
          _
        $region48: #{tpu_custom_call.1} parent=27 // pred_fallthru
          _
        // Predicated region
        $region49: #{tpu_custom_call.1} parent=27 // pred_check
          %p293 = pneg %p133
        $region50: #{tpu_custom_call.1} parent=27 // pred_check_branch
          %295 = sbr.rel (%p293) target = $region52
        $region51: #{tpu_custom_call.1} parent=27 // pred_region
          _
        $region52: #{tpu_custom_call.1} parent=27 // pred_fallthru
          _
      $region28: #{tpu_custom_call.1} parent=5 // pred_fallthru
        _
      %p296 = scmp.le.s32.totalorder 2, %s16
      // Predicated region
      $region53: #{tpu_custom_call.1} parent=5 // pred_check
        %p297 = pneg %p296
      $region54: #{tpu_custom_call.1} parent=5 // pred_check_branch
        %299 = sbr.rel (%p297) target = $region56
      $region55: #{tpu_custom_call.1} parent=5 // pred_region
        %s300 = ssub.s32 %s16, 2
        // Predicated region
        $region57: #{tpu_custom_call.1} parent=55 // pred_check
          %p301 = pneg %p113
        $region58: #{tpu_custom_call.1} parent=55 // pred_check_branch
          %303 = sbr.rel (%p301) target = $region60
        $region59: #{tpu_custom_call.1} parent=55 // pred_region
          %p304 = scmp.lt.s32.totalorder %s27, 1
          %s305 = scalar_select %p304, %s27, 1
          %s306 = smul.addr %s305, 8
          %s307 = scalar_lea.vmem %s2, %s306
        $region60: #{tpu_custom_call.1} parent=55 // pred_fallthru
          _
        // Predicated region
        $region61: #{tpu_custom_call.1} parent=55 // pred_check
          %p308 = pneg %p139
        $region62: #{tpu_custom_call.1} parent=55 // pred_check_branch
          %310 = sbr.rel (%p308) target = $region64
        $region63: #{tpu_custom_call.1} parent=55 // pred_region
          %p311 = scmp.lt.s32.totalorder %s27, 1
          %s312 = scalar_select %p311, %s27, 1
          %s313 = smul.addr %s312, 8
          %s314 = scalar_lea.vmem %s3, %s313
        $region64: #{tpu_custom_call.1} parent=55 // pred_fallthru
          _
      $region56: #{tpu_custom_call.1} parent=5 // pred_fallthru
        _
    $region6: #{tpu_custom_call.1} parent=1 // loop_footer
      %s20 = sadd.s32 1, %s16
    $region7: #{tpu_custom_call.1} parent=1 // loop_footer_branch
      %15 = sbr.rel target = $region3
    $region8: #{tpu_custom_call.1} parent=1 // loop_exit
      _
    %315 = vsyncpa [#allocation5], 1
    %s316 = scalar_lea.sflag [#allocation5], 1
    %317 = vsyncpa %s316, 1
    %318 = vsyncpa [#allocation7], 1
    %s319 = scalar_lea.sflag [#allocation7], 1
    %320 = vsyncpa %s319, 1

</llo_original>
